<compile_context>
chip_gen: v5e
topology: v5e:2x2
jax: 0.10.0
libtpu: 0.0.40
codegen_flags: <defaults>
</compile_context>

<pallas_src>
import numpy as np
import jax
import jax.numpy as jnp
from jax.experimental import pallas as pl
from jax.experimental.pallas import tpu as pltpu

_ACC_ROWS = 8  # sublane height of the accumulator / ones-reduce output


def _pool_rows_matrix(n_out, n_in):
    """[n_out, n_in] 0/1 matrix: row r selects the r-th contiguous group of
    n_in // n_out input rows (window-sum along the sublane axis via MXU)."""
    k = n_in // n_out
    r = np.arange(n_out)[:, None]
    j = np.arange(n_in)[None, :]
    return ((j >= r * k) & (j < r * k + k)).astype(np.float32)


def _pool_cols_matrix(n_in, n_out):
    """[n_in, n_out] 0/1 matrix: column c selects the c-th contiguous group of
    n_in // n_out input columns (window-sum along the lane axis via MXU)."""
    return np.ascontiguousarray(_pool_rows_matrix(n_out, n_in).T)


def _make_kernel(metas, n_mats):
    """Fused multiscale-loss kernel for a static list of per-scale descriptors."""
    n_scales = len(metas)

    def kernel(*refs):
        t_ref = refs[0]                                        # [P, H, W] target block
        pred_refs = refs[1:1 + n_scales]                       # [P, h_i, w_i] pred blocks
        mat_refs = refs[1 + n_scales:1 + n_scales + n_mats]    # resident pool matrices
        out_ref = refs[1 + n_scales + n_mats]                  # [1, 1] SMEM partial loss
        acc_ref = refs[2 + n_scales + n_mats]                  # [8, W] f32 accumulator

        j = pl.program_id(1)                                   # sequential block axis

        @pl.when(j == 0)
        def _init():
            acc_ref[...] = jnp.zeros_like(acc_ref)
            out_ref[0, 0] = jnp.float32(0.0)                   # cheap insurance

        t = t_ref[...]
        if t.dtype != jnp.float32:
            t = t.astype(jnp.float32)
        cur = t                                                # current pooled level

        for m in metas:
            h, w = m["h"], m["w"]
            if m["needs_pool"]:
                x = t if m["src"] == "target" else cur
                if m["r_idx"] is not None:                     # pool rows (batched MXU)
                    R = mat_refs[m["r_idx"]][...]              # [P, h, src_h], resident
                    x = jnp.einsum("phc,pcw->phw", R, x,
                                   preferred_element_type=jnp.float32)
                if m["c_idx"] is not None:                     # pool cols (batched MXU)
                    C = mat_refs[m["c_idx"]][...]              # [P, src_w, w], resident
                    x = jnp.einsum("phc,pcw->phw", x, C,
                                   preferred_element_type=jnp.float32)
                cur = x * m["inv_area"]
            pv = pred_refs[m["i"]][...]
            if pv.dtype != jnp.float32:
                pv = pv.astype(jnp.float32)
            d = pv - cur                                       # [P, h, w]
            sq = jnp.sum(d * d, axis=0)                        # [h, w]  (VPU tile adds)
            # Row-reduce on the otherwise-idle MXU; each of the 8 output rows holds the
            # same column sums (the redundant x8 is divided out once at finalize), so
            # the accumulator stays a tiny [8, W] tile with full-sublane stores.
            part = jnp.dot(jnp.ones((_ACC_ROWS, h), jnp.float32), sq,
                           preferred_element_type=jnp.float32)  # [8, w]
            acc_ref[:, 0:w] += m["const"] * part

        @pl.when(j == pl.num_programs(1) - 1)
        def _finalize():
            # Single cross-lane reduce + scalar SMEM store per core.
            out_ref[0, 0] = jnp.sum(acc_ref[...]) * (1.0 / _ACC_ROWS)

    return kernel


def multiscale_loss(predictions, target, weights=(0.01, 0.02, 0.08, 0.32),
                    max_block_bytes=None):
    """JAX/Pallas equivalent of MultiscaleLoss.forward(predictions, target)."""
    if not isinstance(predictions, (tuple, list)):
        predictions = [predictions]
    assert len(weights) == len(predictions)

    B, C, H, W = target.shape
    planes = B * C
    t_item = target.dtype.itemsize

    # ---- Generation-aware sizing (v7x: 64 MiB VMEM vs 128 MiB on v5e/v6e) -------
    try:
        vmem_cap = int(pltpu.get_tpu_info().vmem_capacity_bytes)
    except Exception:
        vmem_cap = 64 * 1024 * 1024                    # conservative fallback
    if max_block_bytes is None:
        max_block_bytes = min(2 * 1024 * 1024, vmem_cap // 16)

    # Largest divisor of `planes` whose target block stays under the byte cap.
    plane_bytes = H * W * t_item
    cap = max(max_block_bytes, plane_bytes)
    P = 1
    for dv in range(1, planes + 1):
        if planes % dv == 0 and dv * plane_bytes <= cap:
            P = dv

    # ---- Per-scale static plan + hoisted (P-broadcast) pooling matrices ---------
    metas, mats, preds3d = [], [], []
    ch, cw = H, W
    for idx, (p, wt) in enumerate(zip(predictions, weights)):
        pb, pc, h, w = p.shape
        assert (pb, pc) == (B, C)
        # mode='area' with an integer ratio == uniform average pooling.
        # TODO(synk): non-integer 'area' ratios would need fractional-overlap pooling.
        assert H % h == 0 and W % w == 0, "mode='area' here assumes integer ratios"
        if (h, w) == (ch, cw):
            needs_pool, src, kh, kw, sh, sw = False, "prev", 1, 1, ch, cw
        elif ch % h == 0 and cw % w == 0:
            needs_pool, src, kh, kw, sh, sw = True, "prev", ch // h, cw // w, ch, cw
        else:   # non-nested scale: pool straight from the full-resolution target
            needs_pool, src, kh, kw, sh, sw = True, "target", H // h, W // w, H, W
        r_idx = c_idx = None
        if needs_pool:
            if kh > 1:
                r_idx = len(mats)
                mats.append(jnp.asarray(
                    np.broadcast_to(_pool_rows_matrix(h, sh), (P, h, sh))))
            if kw > 1:
                c_idx = len(mats)
                mats.append(jnp.asarray(
                    np.broadcast_to(_pool_cols_matrix(sw, w), (P, sw, w))))
            ch, cw = h, w
        metas.append(dict(
            i=idx, h=h, w=w, src=src, needs_pool=needs_pool,
            inv_area=1.0 / float(kh * kw),
            # weight * 1/N (N = B*C*h*w elements of EPE_map.mean()), folded in-kernel.
            const=float(wt) / float(B * C * h * w),
            r_idx=r_idx, c_idx=c_idx))
        preds3d.append(p.reshape(planes, h, w))        # free reshape, no transpose

    t3d = target.reshape(planes, H, W)                 # free reshape, no transpose

    # ---- Grid: (core split, sequential plane blocks) -----------------------------
    s_total = planes // P
    nc = 2 if (s_total >= 2 and s_total % 2 == 0) else 1   # 2 TCs on v7x; harmless on 1-TC parts
    S = s_total // nc

    def plane_map(i, j):
        return (i * S + j, 0, 0)

    def const_map(i, j):
        return (0, 0, 0)

    in_specs = [pl.BlockSpec((P, H, W), plane_map)]
    for m in metas:
        in_specs.append(pl.BlockSpec((P, m["h"], m["w"]), plane_map))
    for mat in mats:
        in_specs.append(pl.BlockSpec(tuple(mat.shape), const_map))

    # ---- VMEM budget: double-buffered input blocks + resident matrices + acc -----
    blk_in_bytes = P * H * W * t_item
    for parr, m in zip(predictions, metas):
        blk_in_bytes += P * m["h"] * m["w"] * parr.dtype.itemsize
    mat_bytes = sum(int(np.prod(mt.shape)) * 4 for mt in mats)
    need = 2 * blk_in_bytes + mat_bytes + _ACC_ROWS * W * 4 + (2 << 20)
    vmem_limit = int(min(max(need + (4 << 20), 32 << 20), (3 * vmem_cap) // 4))

    kernel = _make_kernel(metas, len(mats))

    out = pl.pallas_call(
        kernel,
        out_shape=jax.ShapeDtypeStruct((nc, 1), jnp.float32),
        grid_spec=pltpu.PrefetchScalarGridSpec(
            num_scalar_prefetch=0,
            grid=(nc, S),
            in_specs=in_specs,
            out_specs=pl.BlockSpec((1, 1), lambda i, j: (i, 0),
                                   memory_space=pltpu.MemorySpace.SMEM),
            scratch_shapes=[pltpu.VMEM((_ACC_ROWS, W), jnp.float32)],
        ),
        compiler_params=pltpu.CompilerParams(
            # Plane-block axis carries the accumulator -> sequential; the leading
            # core-split axis is independent -> parallel (sharded across TCs on v7x).
            dimension_semantics=("parallel", "arbitrary"),
            vmem_limit_bytes=vmem_limit,
        ),
    )(t3d, *preds3d, *mats)
    return jnp.sum(out)


def _reference_loss(predictions, target, weights=(0.01, 0.02, 0.08, 0.32)):
    """Pure-JAX reference (matches the PyTorch module for integer ratios)."""
    loss = jnp.float32(0.0)
    for pred, wt in zip(predictions, weights):
        B, C, h, w = pred.shape
        _, _, H, W = target.shape
        kh, kw = H // h, W // w
        pooled = target.reshape(B, C, h, kh, w, kw).mean(axis=(3, 5))
        loss = loss + jnp.float32(wt) * jnp.mean((pred - pooled) ** 2)
    return loss


if __name__ == "__main__":
    key = jax.random.PRNGKey(0)
    keys = jax.random.split(key, 10)

    # --- Config 1: FlowNet-style multiscale predictions, finest == target res. ----
    B, C, H, W = 2, 2, 16, 16                   # optical flow: 2 channels
    target = jax.random.normal(keys[0], (B, C, H, W), dtype=jnp.float32)
    predictions = [
        jax.random.normal(keys[1], (B, C, 16, 16), dtype=jnp.float32),
        jax.random.normal(keys[2], (B, C, 8, 8), dtype=jnp.float32),
        jax.random.normal(keys[3], (B, C, 4, 4), dtype=jnp.float32),
        jax.random.normal(keys[4], (B, C, 2, 2), dtype=jnp.float32),
    ]
    loss = jax.block_until_ready(multiscale_loss(predictions, target))
    ref = jax.block_until_ready(_reference_loss(predictions, target))
    # Tolerance leaves headroom for MXU f32 pass-precision differences in the pooling
    # matmuls across TPU generations.
    assert jnp.allclose(loss, ref, rtol=2e-3, atol=1e-5), (loss, ref)

    # --- Config 2: more planes + forced small block so the kernel exercises the
    #     multi-step sequential axis and the 2-way core-split partial-sum path. -----
    B2, C2, H2, W2 = 4, 2, 32, 32
    target2 = jax.random.normal(keys[5], (B2, C2, H2, W2), dtype=jnp.float32)
    predictions2 = [
        jax.random.normal(keys[6], (B2, C2, 16, 16), dtype=jnp.float32),
        jax.random.normal(keys[7], (B2, C2, 8, 8), dtype=jnp.float32),
        jax.random.normal(keys[8], (B2, C2, 4, 4), dtype=jnp.float32),
        jax.random.normal(keys[9], (B2, C2, 2, 2), dtype=jnp.float32),
    ]
    loss2 = jax.block_until_ready(
        multiscale_loss(predictions2, target2,
                        max_block_bytes=2 * H2 * W2 * 4))   # force P=2 -> grid (2, 2)
    ref2 = jax.block_until_ready(_reference_loss(predictions2, target2))
    assert jnp.allclose(loss2, ref2, rtol=2e-3, atol=1e-5), (loss2, ref2)

    print("KERNEL_OK")
</pallas_src>

<mosaic_0001>
module attributes {stable_mosaic.version = 11 : i64} {
  func.func @kernel(%arg0: i32, %arg1: i32, %arg2: memref<4x16x16xf32, #tpu.memory_space<vmem>>, %arg3: memref<4x16x16xf32, #tpu.memory_space<vmem>>, %arg4: memref<4x8x8xf32, #tpu.memory_space<vmem>>, %arg5: memref<4x4x4xf32, #tpu.memory_space<vmem>>, %arg6: memref<4x2x2xf32, #tpu.memory_space<vmem>>, %arg7: memref<4x8x16xf32, #tpu.memory_space<vmem>>, %arg8: memref<4x16x8xf32, #tpu.memory_space<vmem>>, %arg9: memref<4x4x8xf32, #tpu.memory_space<vmem>>, %arg10: memref<4x8x4xf32, #tpu.memory_space<vmem>>, %arg11: memref<4x2x4xf32, #tpu.memory_space<vmem>>, %arg12: memref<4x4x2xf32, #tpu.memory_space<vmem>>, %arg13: memref<1x1xf32, #tpu.memory_space<smem>>, %arg14: memref<8x16xf32, #tpu.memory_space<vmem>>) attributes {dimension_semantics = [#tpu.dimension_semantics<parallel>, #tpu.dimension_semantics<arbitrary>], iteration_bounds = array<i64: 1, 1>, scalar_prefetch = 0 : i64, scratch_operands = 1 : i64, tpu.core_type = #tpu.core_type<tc>, window_params = [{transform_indices = @transform_0, window_bounds = array<i64: 4, 16, 16>}, {transform_indices = @transform_1, window_bounds = array<i64: 4, 16, 16>}, {transform_indices = @transform_2, window_bounds = array<i64: 4, 8, 8>}, {transform_indices = @transform_3, window_bounds = array<i64: 4, 4, 4>}, {transform_indices = @transform_4, window_bounds = array<i64: 4, 2, 2>}, {pipeline_mode = #tpu.pipeline_mode<synchronous>, transform_indices = @transform_5, window_bounds = array<i64: 4, 8, 16>}, {pipeline_mode = #tpu.pipeline_mode<synchronous>, transform_indices = @transform_6, window_bounds = array<i64: 4, 16, 8>}, {pipeline_mode = #tpu.pipeline_mode<synchronous>, transform_indices = @transform_7, window_bounds = array<i64: 4, 4, 8>}, {pipeline_mode = #tpu.pipeline_mode<synchronous>, transform_indices = @transform_8, window_bounds = array<i64: 4, 8, 4>}, {pipeline_mode = #tpu.pipeline_mode<synchronous>, transform_indices = @transform_9, window_bounds = array<i64: 4, 2, 4>}, {pipeline_mode = #tpu.pipeline_mode<synchronous>, transform_indices = @transform_10, window_bounds = array<i64: 4, 4, 2>}, {transform_indices = @transform_11, window_bounds = array<i64: 1, 1>}]} {
    %c0_i32 = arith.constant 0 : i32
    %0 = arith.cmpi eq, %arg1, %c0_i32 : i32
    %1 = arith.extui %0 : i1 to i32
    %c0_i32_0 = arith.constant 0 : i32
    %2 = arith.cmpi ne, %1, %c0_i32_0 : i32
    scf.if %2 {
      %cst_75 = arith.constant 0.000000e+00 : f32
      %69 = vector.broadcast %cst_75 : f32 to vector<8x16xf32>
      %c0_76 = arith.constant 0 : index
      %c0_77 = arith.constant 0 : index
      %70 = vector.load %arg14[%c0_76, %c0_77] : memref<8x16xf32, #tpu.memory_space<vmem>>, vector<8x16xf32>
      tpu.vector_store %arg14[%c0_76, %c0_77], %69 {strides = array<i32>} : memref<8x16xf32, #tpu.memory_space<vmem>>, vector<8x16xf32>,
      %cst_78 = arith.constant 0.000000e+00 : f32
      %c0_79 = arith.constant 0 : index
      %c0_80 = arith.constant 0 : index
      %71 = memref.load %arg13[%c0_79, %c0_80] : memref<1x1xf32, #tpu.memory_space<smem>>
      memref.store %cst_78, %arg13[%c0_79, %c0_80] : memref<1x1xf32, #tpu.memory_space<smem>>
    } else {
    }
    %c0 = arith.constant 0 : index
    %c0_1 = arith.constant 0 : index
    %c0_2 = arith.constant 0 : index
    %3 = vector.load %arg2[%c0, %c0_1, %c0_2] : memref<4x16x16xf32, #tpu.memory_space<vmem>>, vector<4x16x16xf32>
    %c0_3 = arith.constant 0 : index
    %c0_4 = arith.constant 0 : index
    %c0_5 = arith.constant 0 : index
    %4 = vector.load %arg3[%c0_3, %c0_4, %c0_5] : memref<4x16x16xf32, #tpu.memory_space<vmem>>, vector<4x16x16xf32>
    %5 = arith.subf %4, %3 : vector<4x16x16xf32>
    %6 = arith.mulf %5, %5 : vector<4x16x16xf32>
    %cst = arith.constant dense<0.000000e+00> : vector<16x16xf32>
    %7 = vector.multi_reduction <add>, %6, %cst [0] : vector<4x16x16xf32> to vector<16x16xf32>
    %cst_6 = arith.constant 1.000000e+00 : f32
    %8 = vector.broadcast %cst_6 : f32 to vector<8x16xf32>
    %cst_7 = arith.constant dense<0.000000e+00> : vector<8x16xf32>
    %9 = tpu.matmul %8, %7, %cst_7 {dimension_numbers = #tpu.dot_dimension_numbers<[1], [0], [0], [1], [0, 0, 1, 1], [], []>} : vector<8x16xf32>, vector<16x16xf32>, vector<8x16xf32> -> vector<8x16xf32>
    %c0_8 = arith.constant 0 : index
    %c0_9 = arith.constant 0 : index
    %10 = vector.load %arg14[%c0_8, %c0_9] : memref<8x16xf32, #tpu.memory_space<vmem>>, vector<8x16xf32>
    %cst_10 = arith.constant 9.76562478E-6 : f32
    %11 = vector.broadcast %cst_10 : f32 to vector<8x16xf32>
    %12 = arith.mulf %11, %9 : vector<8x16xf32>
    %13 = arith.addf %10, %12 : vector<8x16xf32>
    %c0_11 = arith.constant 0 : index
    %c0_12 = arith.constant 0 : index
    %14 = vector.load %arg14[%c0_11, %c0_12] : memref<8x16xf32, #tpu.memory_space<vmem>>, vector<8x16xf32>
    tpu.vector_store %arg14[%c0_11, %c0_12], %13 {strides = array<i32>} : memref<8x16xf32, #tpu.memory_space<vmem>>, vector<8x16xf32>,
    %c0_13 = arith.constant 0 : index
    %c0_14 = arith.constant 0 : index
    %c0_15 = arith.constant 0 : index
    %15 = vector.load %arg7[%c0_13, %c0_14, %c0_15] : memref<4x8x16xf32, #tpu.memory_space<vmem>>, vector<4x8x16xf32>
    "tpu.trace_start"() <{level = 10 : i32, message = "phc,pcw->phw"}> : () -> ()
    %cst_16 = arith.constant dense<0.000000e+00> : vector<4x8x16xf32>
    %16 = tpu.matmul %15, %3, %cst_16 {dimension_numbers = #tpu.dot_dimension_numbers<[2], [1], [1], [2], [0, 0, 0, 1, 1, 2], [0], [0]>} : vector<4x8x16xf32>, vector<4x16x16xf32>, vector<4x8x16xf32> -> vector<4x8x16xf32>
    "tpu.trace_stop"() : () -> ()
    %c0_17 = arith.constant 0 : index
    %c0_18 = arith.constant 0 : index
    %c0_19 = arith.constant 0 : index
    %17 = vector.load %arg8[%c0_17, %c0_18, %c0_19] : memref<4x16x8xf32, #tpu.memory_space<vmem>>, vector<4x16x8xf32>
    "tpu.trace_start"() <{level = 10 : i32, message = "phc,pcw->phw"}> : () -> ()
    %cst_20 = arith.constant dense<0.000000e+00> : vector<4x8x8xf32>
    %18 = tpu.matmul %16, %17, %cst_20 {dimension_numbers = #tpu.dot_dimension_numbers<[2], [1], [1], [2], [0, 0, 0, 1, 1, 2], [0], [0]>} : vector<4x8x16xf32>, vector<4x16x8xf32>, vector<4x8x8xf32> -> vector<4x8x8xf32>
    "tpu.trace_stop"() : () -> ()
    %cst_21 = arith.constant 2.500000e-01 : f32
    %19 = vector.broadcast %cst_21 : f32 to vector<4x8x8xf32>
    %20 = arith.mulf %18, %19 : vector<4x8x8xf32>
    %c0_22 = arith.constant 0 : index
    %c0_23 = arith.constant 0 : index
    %c0_24 = arith.constant 0 : index
    %21 = vector.load %arg4[%c0_22, %c0_23, %c0_24] : memref<4x8x8xf32, #tpu.memory_space<vmem>>, vector<4x8x8xf32>
    %22 = arith.subf %21, %20 : vector<4x8x8xf32>
    %23 = arith.mulf %22, %22 : vector<4x8x8xf32>
    %cst_25 = arith.constant dense<0.000000e+00> : vector<8x8xf32>
    %24 = vector.multi_reduction <add>, %23, %cst_25 [0] : vector<4x8x8xf32> to vector<8x8xf32>
    %cst_26 = arith.constant 1.000000e+00 : f32
    %25 = vector.broadcast %cst_26 : f32 to vector<8x8xf32>
    %cst_27 = arith.constant dense<0.000000e+00> : vector<8x8xf32>
    %26 = tpu.matmul %25, %24, %cst_27 {dimension_numbers = #tpu.dot_dimension_numbers<[1], [0], [0], [1], [0, 0, 1, 1], [], []>} : vector<8x8xf32>, vector<8x8xf32>, vector<8x8xf32> -> vector<8x8xf32>
    %c0_28 = arith.constant 0 : index
    %c0_29 = arith.constant 0 : index
    %27 = vector.load %arg14[%c0_28, %c0_29] : memref<8x16xf32, #tpu.memory_space<vmem>>, vector<8x8xf32>
    %cst_30 = arith.constant 7.812500e-05 : f32
    %28 = vector.broadcast %cst_30 : f32 to vector<8x8xf32>
    %29 = arith.mulf %28, %26 : vector<8x8xf32>
    %30 = arith.addf %27, %29 : vector<8x8xf32>
    %c0_31 = arith.constant 0 : index
    %c0_32 = arith.constant 0 : index
    %31 = vector.load %arg14[%c0_31, %c0_32] : memref<8x16xf32, #tpu.memory_space<vmem>>, vector<8x8xf32>
    tpu.vector_store %arg14[%c0_31, %c0_32], %30 {strides = array<i32>} : memref<8x16xf32, #tpu.memory_space<vmem>>, vector<8x8xf32>,
    %c0_33 = arith.constant 0 : index
    %c0_34 = arith.constant 0 : index
    %c0_35 = arith.constant 0 : index
    %32 = vector.load %arg9[%c0_33, %c0_34, %c0_35] : memref<4x4x8xf32, #tpu.memory_space<vmem>>, vector<4x4x8xf32>
    "tpu.trace_start"() <{level = 10 : i32, message = "phc,pcw->phw"}> : () -> ()
    %cst_36 = arith.constant dense<0.000000e+00> : vector<4x4x8xf32>
    %33 = tpu.matmul %32, %20, %cst_36 {dimension_numbers = #tpu.dot_dimension_numbers<[2], [1], [1], [2], [0, 0, 0, 1, 1, 2], [0], [0]>} : vector<4x4x8xf32>, vector<4x8x8xf32>, vector<4x4x8xf32> -> vector<4x4x8xf32>
    "tpu.trace_stop"() : () -> ()
    %c0_37 = arith.constant 0 : index
    %c0_38 = arith.constant 0 : index
    %c0_39 = arith.constant 0 : index
    %34 = vector.load %arg10[%c0_37, %c0_38, %c0_39] : memref<4x8x4xf32, #tpu.memory_space<vmem>>, vector<4x8x4xf32>
    "tpu.trace_start"() <{level = 10 : i32, message = "phc,pcw->phw"}> : () -> ()
    %cst_40 = arith.constant dense<0.000000e+00> : vector<4x4x4xf32>
    %35 = tpu.matmul %33, %34, %cst_40 {dimension_numbers = #tpu.dot_dimension_numbers<[2], [1], [1], [2], [0, 0, 0, 1, 1, 2], [0], [0]>} : vector<4x4x8xf32>, vector<4x8x4xf32>, vector<4x4x4xf32> -> vector<4x4x4xf32>
    "tpu.trace_stop"() : () -> ()
    %cst_41 = arith.constant 2.500000e-01 : f32
    %36 = vector.broadcast %cst_41 : f32 to vector<4x4x4xf32>
    %37 = arith.mulf %35, %36 : vector<4x4x4xf32>
    %c0_42 = arith.constant 0 : index
    %c0_43 = arith.constant 0 : index
    %c0_44 = arith.constant 0 : index
    %38 = vector.load %arg5[%c0_42, %c0_43, %c0_44] : memref<4x4x4xf32, #tpu.memory_space<vmem>>, vector<4x4x4xf32>
    %39 = arith.subf %38, %37 : vector<4x4x4xf32>
    %40 = arith.mulf %39, %39 : vector<4x4x4xf32>
    %cst_45 = arith.constant dense<0.000000e+00> : vector<4x4xf32>
    %41 = vector.multi_reduction <add>, %40, %cst_45 [0] : vector<4x4x4xf32> to vector<4x4xf32>
    %cst_46 = arith.constant 1.000000e+00 : f32
    %42 = vector.broadcast %cst_46 : f32 to vector<8x4xf32>
    %cst_47 = arith.constant dense<0.000000e+00> : vector<8x4xf32>
    %43 = tpu.matmul %42, %41, %cst_47 {dimension_numbers = #tpu.dot_dimension_numbers<[1], [0], [0], [1], [0, 0, 1, 1], [], []>} : vector<8x4xf32>, vector<4x4xf32>, vector<8x4xf32> -> vector<8x4xf32>
    %c0_48 = arith.constant 0 : index
    %c0_49 = arith.constant 0 : index
    %44 = vector.load %arg14[%c0_48, %c0_49] : memref<8x16xf32, #tpu.memory_space<vmem>>, vector<8x4xf32>
    %cst_50 = arith.constant 1.250000e-03 : f32
    %45 = vector.broadcast %cst_50 : f32 to vector<8x4xf32>
    %46 = arith.mulf %45, %43 : vector<8x4xf32>
    %47 = arith.addf %44, %46 : vector<8x4xf32>
    %c0_51 = arith.constant 0 : index
    %c0_52 = arith.constant 0 : index
    %48 = vector.load %arg14[%c0_51, %c0_52] : memref<8x16xf32, #tpu.memory_space<vmem>>, vector<8x4xf32>
    tpu.vector_store %arg14[%c0_51, %c0_52], %47 {strides = array<i32>} : memref<8x16xf32, #tpu.memory_space<vmem>>, vector<8x4xf32>,
    %c0_53 = arith.constant 0 : index
    %c0_54 = arith.constant 0 : index
    %c0_55 = arith.constant 0 : index
    %49 = vector.load %arg11[%c0_53, %c0_54, %c0_55] : memref<4x2x4xf32, #tpu.memory_space<vmem>>, vector<4x2x4xf32>
    "tpu.trace_start"() <{level = 10 : i32, message = "phc,pcw->phw"}> : () -> ()
    %cst_56 = arith.constant dense<0.000000e+00> : vector<4x2x4xf32>
    %50 = tpu.matmul %49, %37, %cst_56 {dimension_numbers = #tpu.dot_dimension_numbers<[2], [1], [1], [2], [0, 0, 0, 1, 1, 2], [0], [0]>} : vector<4x2x4xf32>, vector<4x4x4xf32>, vector<4x2x4xf32> -> vector<4x2x4xf32>
    "tpu.trace_stop"() : () -> ()
    %c0_57 = arith.constant 0 : index
    %c0_58 = arith.constant 0 : index
    %c0_59 = arith.constant 0 : index
    %51 = vector.load %arg12[%c0_57, %c0_58, %c0_59] : memref<4x4x2xf32, #tpu.memory_space<vmem>>, vector<4x4x2xf32>
    "tpu.trace_start"() <{level = 10 : i32, message = "phc,pcw->phw"}> : () -> ()
    %cst_60 = arith.constant dense<0.000000e+00> : vector<4x2x2xf32>
    %52 = tpu.matmul %50, %51, %cst_60 {dimension_numbers = #tpu.dot_dimension_numbers<[2], [1], [1], [2], [0, 0, 0, 1, 1, 2], [0], [0]>} : vector<4x2x4xf32>, vector<4x4x2xf32>, vector<4x2x2xf32> -> vector<4x2x2xf32>
    "tpu.trace_stop"() : () -> ()
    %cst_61 = arith.constant 2.500000e-01 : f32
    %53 = vector.broadcast %cst_61 : f32 to vector<4x2x2xf32>
    %54 = arith.mulf %52, %53 : vector<4x2x2xf32>
    %c0_62 = arith.constant 0 : index
    %c0_63 = arith.constant 0 : index
    %c0_64 = arith.constant 0 : index
    %55 = vector.load %arg6[%c0_62, %c0_63, %c0_64] : memref<4x2x2xf32, #tpu.memory_space<vmem>>, vector<4x2x2xf32>
    %56 = arith.subf %55, %54 : vector<4x2x2xf32>
    %57 = arith.mulf %56, %56 : vector<4x2x2xf32>
    %cst_65 = arith.constant dense<0.000000e+00> : vector<2x2xf32>
    %58 = vector.multi_reduction <add>, %57, %cst_65 [0] : vector<4x2x2xf32> to vector<2x2xf32>
    %cst_66 = arith.constant 1.000000e+00 : f32
    %59 = vector.broadcast %cst_66 : f32 to vector<8x2xf32>
    %cst_67 = arith.constant dense<0.000000e+00> : vector<8x2xf32>
    %60 = tpu.matmul %59, %58, %cst_67 {dimension_numbers = #tpu.dot_dimension_numbers<[1], [0], [0], [1], [0, 0, 1, 1], [], []>} : vector<8x2xf32>, vector<2x2xf32>, vector<8x2xf32> -> vector<8x2xf32>
    %c0_68 = arith.constant 0 : index
    %c0_69 = arith.constant 0 : index
    %61 = vector.load %arg14[%c0_68, %c0_69] : memref<8x16xf32, #tpu.memory_space<vmem>>, vector<8x2xf32>
    %cst_70 = arith.constant 2.000000e-02 : f32
    %62 = vector.broadcast %cst_70 : f32 to vector<8x2xf32>
    %63 = arith.mulf %62, %60 : vector<8x2xf32>
    %64 = arith.addf %61, %63 : vector<8x2xf32>
    %c0_71 = arith.constant 0 : index
    %c0_72 = arith.constant 0 : index
    %65 = vector.load %arg14[%c0_71, %c0_72] : memref<8x16xf32, #tpu.memory_space<vmem>>, vector<8x2xf32>
    tpu.vector_store %arg14[%c0_71, %c0_72], %64 {strides = array<i32>} : memref<8x16xf32, #tpu.memory_space<vmem>>, vector<8x2xf32>,
    %c0_i32_73 = arith.constant 0 : i32
    %66 = arith.cmpi eq, %arg1, %c0_i32_73 : i32
    %67 = arith.extui %66 : i1 to i32
    %c0_i32_74 = arith.constant 0 : i32
    %68 = arith.cmpi ne, %67, %c0_i32_74 : i32
    scf.if %68 {
      %c0_75 = arith.constant 0 : index
      %c0_76 = arith.constant 0 : index
      %69 = vector.load %arg14[%c0_75, %c0_76] : memref<8x16xf32, #tpu.memory_space<vmem>>, vector<8x16xf32>
      %70 = vector.shape_cast %69 : vector<8x16xf32> to vector<1x8x16xf32>
      %cst_77 = arith.constant dense<0.000000e+00> : vector<1xf32>
      %71 = vector.multi_reduction <add>, %70, %cst_77 [1, 2] : vector<1x8x16xf32> to vector<1xf32>
      %72 = vector.shape_cast %71 : vector<1xf32> to vector<1x1x1xf32>
      %73 = vector.extract %72[0, 0, 0] : f32 from vector<1x1x1xf32>
      %cst_78 = arith.constant 1.250000e-01 : f32
      %74 = arith.mulf %73, %cst_78 : f32
      %c0_79 = arith.constant 0 : index
      %c0_80 = arith.constant 0 : index
      %75 = memref.load %arg13[%c0_79, %c0_80] : memref<1x1xf32, #tpu.memory_space<smem>>
      memref.store %74, %arg13[%c0_79, %c0_80] : memref<1x1xf32, #tpu.memory_space<smem>>
    } else {
    }
    return
  }
  func.func @transform_0(%arg0: i32, %arg1: i32) -> (i32, i32, i32) {
    %c1_i32 = arith.constant 1 : i32
    %0 = arith.muli %arg0, %c1_i32 : i32
    %1 = arith.addi %0, %arg1 : i32
    %c0_i32 = arith.constant 0 : i32
    %c0_i32_0 = arith.constant 0 : i32
    %c0_i32_1 = arith.constant 0 : i32
    return %1, %c0_i32, %c0_i32_0 : i32, i32, i32
  }
  func.func @transform_1(%arg0: i32, %arg1: i32) -> (i32, i32, i32) {
    %c1_i32 = arith.constant 1 : i32
    %0 = arith.muli %arg0, %c1_i32 : i32
    %1 = arith.addi %0, %arg1 : i32
    %c0_i32 = arith.constant 0 : i32
    %c0_i32_0 = arith.constant 0 : i32
    %c0_i32_1 = arith.constant 0 : i32
    return %1, %c0_i32, %c0_i32_0 : i32, i32, i32
  }
  func.func @transform_2(%arg0: i32, %arg1: i32) -> (i32, i32, i32) {
    %c1_i32 = arith.constant 1 : i32
    %0 = arith.muli %arg0, %c1_i32 : i32
    %1 = arith.addi %0, %arg1 : i32
    %c0_i32 = arith.constant 0 : i32
    %c0_i32_0 = arith.constant 0 : i32
    %c0_i32_1 = arith.constant 0 : i32
    return %1, %c0_i32, %c0_i32_0 : i32, i32, i32
  }
  func.func @transform_3(%arg0: i32, %arg1: i32) -> (i32, i32, i32) {
    %c1_i32 = arith.constant 1 : i32
    %0 = arith.muli %arg0, %c1_i32 : i32
    %1 = arith.addi %0, %arg1 : i32
    %c0_i32 = arith.constant 0 : i32
    %c0_i32_0 = arith.constant 0 : i32
    %c0_i32_1 = arith.constant 0 : i32
    return %1, %c0_i32, %c0_i32_0 : i32, i32, i32
  }
  func.func @transform_4(%arg0: i32, %arg1: i32) -> (i32, i32, i32) {
    %c1_i32 = arith.constant 1 : i32
    %0 = arith.muli %arg0, %c1_i32 : i32
    %1 = arith.addi %0, %arg1 : i32
    %c0_i32 = arith.constant 0 : i32
    %c0_i32_0 = arith.constant 0 : i32
    %c0_i32_1 = arith.constant 0 : i32
    return %1, %c0_i32, %c0_i32_0 : i32, i32, i32
  }
  func.func @transform_5(%arg0: i32, %arg1: i32) -> (i32, i32, i32) {
    %c0_i32 = arith.constant 0 : i32
    %c0_i32_0 = arith.constant 0 : i32
    %c0_i32_1 = arith.constant 0 : i32
    %c0_i32_2 = arith.constant 0 : i32
    return %c0_i32, %c0_i32_0, %c0_i32_1 : i32, i32, i32
  }
  func.func @transform_6(%arg0: i32, %arg1: i32) -> (i32, i32, i32) {
    %c0_i32 = arith.constant 0 : i32
    %c0_i32_0 = arith.constant 0 : i32
    %c0_i32_1 = arith.constant 0 : i32
    %c0_i32_2 = arith.constant 0 : i32
    return %c0_i32, %c0_i32_0, %c0_i32_1 : i32, i32, i32
  }
  func.func @transform_7(%arg0: i32, %arg1: i32) -> (i32, i32, i32) {
    %c0_i32 = arith.constant 0 : i32
    %c0_i32_0 = arith.constant 0 : i32
    %c0_i32_1 = arith.constant 0 : i32
    %c0_i32_2 = arith.constant 0 : i32
    return %c0_i32, %c0_i32_0, %c0_i32_1 : i32, i32, i32
  }
  func.func @transform_8(%arg0: i32, %arg1: i32) -> (i32, i32, i32) {
    %c0_i32 = arith.constant 0 : i32
    %c0_i32_0 = arith.constant 0 : i32
    %c0_i32_1 = arith.constant 0 : i32
    %c0_i32_2 = arith.constant 0 : i32
    return %c0_i32, %c0_i32_0, %c0_i32_1 : i32, i32, i32
  }
  func.func @transform_9(%arg0: i32, %arg1: i32) -> (i32, i32, i32) {
    %c0_i32 = arith.constant 0 : i32
    %c0_i32_0 = arith.constant 0 : i32
    %c0_i32_1 = arith.constant 0 : i32
    %c0_i32_2 = arith.constant 0 : i32
    return %c0_i32, %c0_i32_0, %c0_i32_1 : i32, i32, i32
  }
  func.func @transform_10(%arg0: i32, %arg1: i32) -> (i32, i32, i32) {
    %c0_i32 = arith.constant 0 : i32
    %c0_i32_0 = arith.constant 0 : i32
    %c0_i32_1 = arith.constant 0 : i32
    %c0_i32_2 = arith.constant 0 : i32
    return %c0_i32, %c0_i32_0, %c0_i32_1 : i32, i32, i32
  }
  func.func @transform_11(%arg0: i32, %arg1: i32) -> (i32, i32) {
    %c0_i32 = arith.constant 0 : i32
    %c0_i32_0 = arith.constant 0 : i32
    return %arg0, %c0_i32 : i32, i32
  }
}

</mosaic_0001>

<llo_original>
// kernel: tpu_custom_call.1
$region0: #{tpu_custom_call.1}
  #allocation0 [shape = 'u32[]', space=smem, size = 0x4, offset = 0x4, fixed_abs, tag = 'smem constant byte address 0x4 - core index']
  #allocation1 [shape = 'u32[72,128]{1,0:T(1,128)}', space=vmem, size = 0x9000, scoped, tag = 'internal scratch']
  #allocation2 [shape = 'f32[8,16]{1,0:T(8,128)}', space=vmem, size = 0x1000, scoped, tag = 'scratch operand']
  %s0 = inlined_call_operand.vmem [shape: f32[4,16,16], index: 0, kind: input, shape index: {}]
  %s1 = inlined_call_operand.hbm [shape: f32[4,16,16], index: 1, kind: input, shape index: {}]
  %s2 = inlined_call_operand.vmem [shape: f32[4,8,8], index: 2, kind: input, shape index: {}]
  %s3 = inlined_call_operand.vmem [shape: f32[4,4,4], index: 3, kind: input, shape index: {}]
  %s4 = inlined_call_operand.vmem [shape: f32[4,2,2], index: 4, kind: input, shape index: {}]
  %s5 = inlined_call_operand.hbm [shape: f32[4,8,16], index: 5, kind: input, shape index: {}]
  %s6 = inlined_call_operand.vmem [shape: f32[4,16,8], index: 6, kind: input, shape index: {}]
  %s7 = inlined_call_operand.hbm [shape: f32[4,4,8], index: 7, kind: input, shape index: {}]
  %s8 = inlined_call_operand.vmem [shape: f32[4,8,4], index: 8, kind: input, shape index: {}]
  %s9 = inlined_call_operand.vmem [shape: f32[4,2,4], index: 9, kind: input, shape index: {}]
  %s10 = inlined_call_operand.vmem [shape: f32[4,4,2], index: 10, kind: input, shape index: {}]
  %s11 = inlined_call_operand.hbm [shape: f32[1,1], index: 11, kind: output, shape index: {}]
  %s12 = sld [smem:[#allocation0]]
  $region74: #{tpu_custom_call.1} parent=0
    _
  %s14 = ssub.s32 1, %s12
  %s15 = scalar_select 0, %s14, %s12
  $region1: #{tpu_custom_call.1} parent=0
    #allocation3 [shape = 'u8[32768]{0}', space=vmem, size = 0x8000, scoped, tag = 'input window, operand 1, single buffered']
    #allocation4 [shape = 's32[1]{0}', space=sflag, size = 0x4, scoped, tag = 'scoped memory for tpu_custom_call.1']
    #allocation5 [shape = 's32[1]{0}', space=sflag, size = 0x4, scoped, tag = 'scoped memory for tpu_custom_call.1']
    #allocation6 [shape = 'u8[16384]{0}', space=vmem, size = 0x4000, scoped, tag = 'input window, operand 5, single buffered']
    #allocation7 [shape = 's32[1]{0}', space=sflag, size = 0x4, scoped, tag = 'scoped memory for tpu_custom_call.1']
    #allocation8 [shape = 'u8[8192]{0}', space=vmem, size = 0x2000, scoped, tag = 'input window, operand 7, single buffered']
    #allocation9 [shape = 'u8[512]{0}', space=smem, size = 0x200, scoped, tag = 'output window, operand 0, single buffered']
    %16 = vsyncpa [#allocation4], 0
    %17 = vsyncpa [#allocation7], 0
    %18 = vsyncpa [#allocation5], 0
    // Predicated region
    $region2: #{tpu_custom_call.1} parent=1 // pred_check
      _
    $region3: #{tpu_custom_call.1} parent=1 // pred_check_branch
      %20 = sbr.rel (0) target = $region5
    $region4: #{tpu_custom_call.1} parent=1 // pred_region
      %s21 = sadd.s32 0, 0
      %s22 = smul.u32 4, %s21
      %p23 = scmp.lt.s32.totalorder %s22, 3
      %s24 = scalar_select %p23, %s22, 3
      %s25 = smul.addr %s24, 2
      %s26 = smul.addr %s25, 8
      %s27 = scalar_lea.vmem %s0, %s26
      %s28 = sadd.s32 0, 0
      %s29 = smul.u32 4, %s28
    $region5: #{tpu_custom_call.1} parent=1 // pred_fallthru
      _
    // Predicated region
    $region6: #{tpu_custom_call.1} parent=1 // pred_check
      _
    $region7: #{tpu_custom_call.1} parent=1 // pred_check_branch
      %31 = sbr.rel (0) target = $region9
    $region8: #{tpu_custom_call.1} parent=1 // pred_region
      %s32 = sadd.s32 0, 0
      %s33 = smul.u32 4, %s32
      %35 = vsyncadd [#allocation4], 0
      %s36 = smul.addr %s33, 2
      %s37 = smul.addr %s36, 8
      %s38 = scalar_lea.hbm %s1, %s37
      %s39 = sshll.u32 %s38, 4
      %s40 = int_to_ptr.hbm [resolvable:$true] %s39
      %s41 = sshll.u32 [#allocation3], 4
      %s42 = int_to_ptr.vmem [resolvable:$true] %s41
      %47 = dma.hbm_to_vmem [thread:$0]  %s40, 1024, %s42, [#allocation4], 128, 128, 8
    $region9: #{tpu_custom_call.1} parent=1 // pred_fallthru
      _
    // Predicated region
    $region10: #{tpu_custom_call.1} parent=1 // pred_check
      _
    $region11: #{tpu_custom_call.1} parent=1 // pred_check_branch
      %49 = sbr.rel (0) target = $region13
    $region12: #{tpu_custom_call.1} parent=1 // pred_region
      %s50 = sadd.s32 0, 0
      %s51 = smul.u32 4, %s50
      %p52 = scmp.lt.s32.totalorder %s51, 3
      %s53 = scalar_select %p52, %s51, 3
      %s54 = smul.addr %s53, 8
      %s55 = scalar_lea.vmem %s2, %s54
      %s56 = sadd.s32 0, 0
      %s57 = smul.u32 4, %s56
    $region13: #{tpu_custom_call.1} parent=1 // pred_fallthru
      _
    // Predicated region
    $region14: #{tpu_custom_call.1} parent=1 // pred_check
      _
    $region15: #{tpu_custom_call.1} parent=1 // pred_check_branch
      %59 = sbr.rel (0) target = $region17
    $region16: #{tpu_custom_call.1} parent=1 // pred_region
      %s60 = sadd.s32 0, 0
      %s61 = smul.u32 4, %s60
      %p62 = scmp.lt.s32.totalorder %s61, 3
      %s63 = scalar_select %p62, %s61, 3
      %s64 = smul.addr %s63, 4
      %s65 = scalar_lea.vmem %s3, %s64
      %s66 = sadd.s32 0, 0
      %s67 = smul.u32 4, %s66
    $region17: #{tpu_custom_call.1} parent=1 // pred_fallthru
      _
    // Predicated region
    $region18: #{tpu_custom_call.1} parent=1 // pred_check
      _
    $region19: #{tpu_custom_call.1} parent=1 // pred_check_branch
      %69 = sbr.rel (0) target = $region21
    $region20: #{tpu_custom_call.1} parent=1 // pred_region
      %s70 = sadd.s32 0, 0
      %s71 = smul.u32 4, %s70
      %p72 = scmp.lt.s32.totalorder %s71, 3
      %s73 = scalar_select %p72, %s71, 3
      %s74 = smul.addr %s73, 2
      %s75 = scalar_lea.vmem %s4, %s74
      %s76 = sadd.s32 0, 0
      %s77 = smul.u32 4, %s76
    $region21: #{tpu_custom_call.1} parent=1 // pred_fallthru
      _
    // Predicated region
    $region22: #{tpu_custom_call.1} parent=1 // pred_check
      _
    $region23: #{tpu_custom_call.1} parent=1 // pred_check_branch
      %79 = sbr.rel (0) target = $region25
    $region24: #{tpu_custom_call.1} parent=1 // pred_region
      %81 = vsyncadd [#allocation7], 0
      %s82 = sshll.u32 %s5, 4
      %s83 = int_to_ptr.hbm [resolvable:$true] %s82
      %s84 = sshll.u32 [#allocation6], 4
      %s85 = int_to_ptr.vmem [resolvable:$true] %s84
      %90 = dma.hbm_to_vmem [thread:$0]  %s83, 512, %s85, [#allocation7], 128, 128, 8
    $region25: #{tpu_custom_call.1} parent=1 // pred_fallthru
      _
    // Predicated region
    $region26: #{tpu_custom_call.1} parent=1 // pred_check
      _
    $region27: #{tpu_custom_call.1} parent=1 // pred_check_branch
      %92 = sbr.rel (0) target = $region29
    $region28: #{tpu_custom_call.1} parent=1 // pred_region
      _
    $region29: #{tpu_custom_call.1} parent=1 // pred_fallthru
      _
    // Predicated region
    $region30: #{tpu_custom_call.1} parent=1 // pred_check
      _
    $region31: #{tpu_custom_call.1} parent=1 // pred_check_branch
      %94 = sbr.rel (0) target = $region33
    $region32: #{tpu_custom_call.1} parent=1 // pred_region
      %96 = vsyncadd [#allocation7], 0
      %s97 = sshll.u32 %s7, 4
      %s98 = int_to_ptr.hbm [resolvable:$true] %s97
      %s99 = sshll.u32 [#allocation8], 4
      %s100 = int_to_ptr.vmem [resolvable:$true] %s99
      %105 = dma.hbm_to_vmem [thread:$0]  %s98, 256, %s100, [#allocation7], 64, 64, 4
    $region33: #{tpu_custom_call.1} parent=1 // pred_fallthru
      _
    // Predicated region
    $region34: #{tpu_custom_call.1} parent=1 // pred_check
      _
    $region35: #{tpu_custom_call.1} parent=1 // pred_check_branch
      %107 = sbr.rel (0) target = $region37
    $region36: #{tpu_custom_call.1} parent=1 // pred_region
      _
    $region37: #{tpu_custom_call.1} parent=1 // pred_fallthru
      _
    // Predicated region
    $region38: #{tpu_custom_call.1} parent=1 // pred_check
      _
    $region39: #{tpu_custom_call.1} parent=1 // pred_check_branch
      %109 = sbr.rel (0) target = $region41
    $region40: #{tpu_custom_call.1} parent=1 // pred_region
      _
    $region41: #{tpu_custom_call.1} parent=1 // pred_fallthru
      _
    // Predicated region
    $region42: #{tpu_custom_call.1} parent=1 // pred_check
      _
    $region43: #{tpu_custom_call.1} parent=1 // pred_check_branch
      %111 = sbr.rel (0) target = $region45
    $region44: #{tpu_custom_call.1} parent=1 // pred_region
      _
    $region45: #{tpu_custom_call.1} parent=1 // pred_fallthru
      _
    // Predicated region
    $region46: #{tpu_custom_call.1} parent=1 // pred_check
      _
    $region47: #{tpu_custom_call.1} parent=1 // pred_check_branch
      %113 = sbr.rel (0) target = $region49
    $region48: #{tpu_custom_call.1} parent=1 // pred_region
      %115 = dma.done [#allocation4], 1024
    $region49: #{tpu_custom_call.1} parent=1 // pred_fallthru
      _
    // Predicated region
    $region50: #{tpu_custom_call.1} parent=1 // pred_check
      _
    $region51: #{tpu_custom_call.1} parent=1 // pred_check_branch
      %117 = sbr.rel (0) target = $region53
    $region52: #{tpu_custom_call.1} parent=1 // pred_region
      %119 = dma.done [#allocation7], 512
    $region53: #{tpu_custom_call.1} parent=1 // pred_fallthru
      _
    // Predicated region
    $region54: #{tpu_custom_call.1} parent=1 // pred_check
      _
    $region55: #{tpu_custom_call.1} parent=1 // pred_check_branch
      %121 = sbr.rel (0) target = $region57
    $region56: #{tpu_custom_call.1} parent=1 // pred_region
      %123 = dma.done [#allocation7], 256
    $region57: #{tpu_custom_call.1} parent=1 // pred_fallthru
      _
    %s124 = sadd.s32 0, 0
    %s125 = smul.u32 4, %s124
    %p126 = scmp.lt.s32.totalorder %s125, 3
    %s127 = scalar_select %p126, %s125, 3
    %s128 = smul.addr %s127, 2
    %s129 = smul.addr %s128, 8
    %s130 = scalar_lea.vmem %s0, %s129
    %s131 = sadd.s32 0, 0
    %s132 = smul.u32 4, %s131
    %p133 = scmp.lt.s32.totalorder %s132, 3
    %s134 = scalar_select %p133, %s132, 3
    %s135 = smul.addr %s134, 8
    %s136 = scalar_lea.vmem %s2, %s135
    %s137 = sadd.s32 0, 0
    %s138 = smul.u32 4, %s137
    %p139 = scmp.lt.s32.totalorder %s138, 3
    %s140 = scalar_select %p139, %s138, 3
    %s141 = smul.addr %s140, 4
    %s142 = scalar_lea.vmem %s3, %s141
    %s143 = sadd.s32 0, 0
    %s144 = smul.u32 4, %s143
    %p145 = scmp.lt.s32.totalorder %s144, 3
    %s146 = scalar_select %p145, %s144, 3
    %s147 = smul.addr %s146, 2
    %s148 = scalar_lea.vmem %s4, %s147
    %s149 = sadd.s32 0, 0
    %s150 = smul.u32 4, %s149
    %p151 = scmp.lt.s32.totalorder %s150, 3
    %s152 = scalar_select %p151, %s150, 3
    %s153 = smul.addr %s152, 2
    %s154 = smul.addr %s153, 8
    %s155 = scalar_lea.vmem %s0, %s154
    %s156 = sadd.s32 0, 0
    %s157 = smul.u32 4, %s156
    %s158 = sadd.s32 0, 0
    %s159 = smul.u32 4, %s158
    %s160 = sadd.s32 0, 0
    %s161 = smul.u32 4, %s160
    %p162 = scmp.lt.s32.totalorder %s161, 3
    %s163 = scalar_select %p162, %s161, 3
    %s164 = smul.addr %s163, 8
    %s165 = scalar_lea.vmem %s2, %s164
    %s166 = sadd.s32 0, 0
    %s167 = smul.u32 4, %s166
    %s168 = sadd.s32 0, 0
    %s169 = smul.u32 4, %s168
    %p170 = scmp.lt.s32.totalorder %s169, 3
    %s171 = scalar_select %p170, %s169, 3
    %s172 = smul.addr %s171, 4
    %s173 = scalar_lea.vmem %s3, %s172
    %s174 = sadd.s32 0, 0
    %s175 = smul.u32 4, %s174
    %s176 = sadd.s32 0, 0
    %s177 = smul.u32 4, %s176
    %p178 = scmp.lt.s32.totalorder %s177, 3
    %s179 = scalar_select %p178, %s177, 3
    %s180 = smul.addr %s179, 2
    %s181 = scalar_lea.vmem %s4, %s180
    %s182 = sadd.s32 0, 0
    %s183 = smul.u32 4, %s182
    %p184 = scmp.eq.s32.totalorder 0, 0
    // Predicated region
    $region58: #{tpu_custom_call.1} parent=1 // pred_check
      %p185 = pneg %p184
    $region59: #{tpu_custom_call.1} parent=1 // pred_check_branch
      %187 = sbr.rel (%p185) target = $region61
    $region60: #{tpu_custom_call.1} parent=1 // pred_region
      %vm188 = vcmask 130048
      %189 = vst.msk [vmem:[#allocation2] sm:$0xff] %vm188, 0.0
      %s190 = scalar_lea.smem [#allocation9], 0
      %191 = sst [smem:[%s190]] 0.0
    $region61: #{tpu_custom_call.1} parent=1 // pred_fallthru
      _
    %v192 = vld [vmem:[%s155] sm:$0xff]
    %v193 = vld [vmem:[%s155 + $0x8] sm:$0xff]
    %v194 = vld [vmem:[%s155 + $0x10] sm:$0xff]
    %v195 = vld [vmem:[%s155 + $0x18] sm:$0xff]
    %v196 = vld [vmem:[%s155 + $0x20] sm:$0xff]
    %v197 = vld [vmem:[%s155 + $0x28] sm:$0xff]
    %v198 = vld [vmem:[%s155 + $0x30] sm:$0xff]
    %v199 = vld [vmem:[%s155 + $0x38] sm:$0xff]
    %v200 = vld [vmem:[#allocation3] sm:$0xff]
    %v201 = vld [vmem:[#allocation3 + $0x8] sm:$0xff]
    %v202 = vld [vmem:[#allocation3 + $0x10] sm:$0xff]
    %v203 = vld [vmem:[#allocation3 + $0x18] sm:$0xff]
    %v204 = vld [vmem:[#allocation3 + $0x20] sm:$0xff]
    %v205 = vld [vmem:[#allocation3 + $0x28] sm:$0xff]
    %v206 = vld [vmem:[#allocation3 + $0x30] sm:$0xff]
    %v207 = vld [vmem:[#allocation3 + $0x38] sm:$0xff]
    %v208 = vsub.f32 %v200, %v192
    %v209 = vsub.f32 %v201, %v193
    %v210 = vsub.f32 %v202, %v194
    %v211 = vsub.f32 %v203, %v195
    %v212 = vsub.f32 %v204, %v196
    %v213 = vsub.f32 %v205, %v197
    %v214 = vsub.f32 %v206, %v198
    %v215 = vsub.f32 %v207, %v199
    %v216 = vmul.f32 %v208, %v208
    %v217 = vmul.f32 %v209, %v209
    %v218 = vmul.f32 %v210, %v210
    %v219 = vmul.f32 %v211, %v211
    %v220 = vmul.f32 %v212, %v212
    %v221 = vmul.f32 %v213, %v213
    %v222 = vmul.f32 %v214, %v214
    %v223 = vmul.f32 %v215, %v215
    %vm224 = vcmask 130048
    %v225 = vsel %vm224, %v216, 0.0
    %v226 = vsel %vm224, %v218, 0.0
    %v227 = vadd.f32 %v225, %v226
    %v228 = vsel %vm224, %v220, 0.0
    %v229 = vadd.f32 %v227, %v228
    %v230 = vsel %vm224, %v222, 0.0
    %v231 = vadd.f32 %v229, %v230
    %v232 = vsel %vm224, %v217, 0.0
    %v233 = vsel %vm224, %v219, 0.0
    %v234 = vadd.f32 %v232, %v233
    %v235 = vsel %vm224, %v221, 0.0
    %v236 = vadd.f32 %v234, %v235
    %v237 = vsel %vm224, %v223, 0.0
    %v238 = vadd.f32 %v236, %v237
    %v240 = vsel %vm224, 1.0, 0
    %242 = vmatpush.msra.mxu0 0.0
    %243 = vmatpush.msra.mxu0 0.0
    %244 = vmatpush.msra.mxu0 0.0
    %245 = vmatpush.msra.mxu0 0.0
    %246 = vmatpush.msra.mxu0 0.0
    %247 = vmatpush.msra.mxu0 0.0
    %248 = vmatpush.msra.mxu0 0.0
    %249 = vmatpush.msra.mxu0 0.0
    %250 = vmatpush.msra.mxu0 0.0
    %251 = vmatpush.msra.mxu0 0.0
    %252 = vmatpush.msra.mxu0 0.0
    %253 = vmatpush.msra.mxu0 0.0
    %254 = vmatpush.msra.mxu0 0.0
    %255 = vmatpush.msra.mxu0 0.0
    %256 = vmatpush.msra.mxu0 %v238
    %257 = vmatpush.msra.mxu0 %v231
    %258 = vmatmul.f32.gmra.mxu0 %v240
    %v259 = vpop.f32.mrf.mxu0
    %v260 = vadd.f32 0.0, %v259
    %261 = vdwg.mxu0
    %v262 = vld [vmem:[#allocation2] sm:$0xff]
    %v263 = vmul.f32 %v260, 9.765625e-06
    %v264 = vadd.f32 %v262, %v263
    %265 = vst.msk [vmem:[#allocation2] sm:$0xff] %vm224, %v264
    %v266 = vld [vmem:[#allocation6] sm:$0xff]
    %v267 = vld [vmem:[#allocation6 + $0x8] sm:$0xff]
    %v268 = vld [vmem:[#allocation6 + $0x10] sm:$0xff]
    %v269 = vld [vmem:[#allocation6 + $0x18] sm:$0xff]
    %v271 = vsel %vm224, %v266, 0
    %273 = vmatpush.msra.mxu0 0.0
    %274 = vmatpush.msra.mxu0 0.0
    %275 = vmatpush.msra.mxu0 0.0
    %276 = vmatpush.msra.mxu0 0.0
    %277 = vmatpush.msra.mxu0 0.0
    %278 = vmatpush.msra.mxu0 0.0
    %279 = vmatpush.msra.mxu0 0.0
    %280 = vmatpush.msra.mxu0 0.0
    %281 = vmatpush.msra.mxu0 0.0
    %282 = vmatpush.msra.mxu0 0.0
    %283 = vmatpush.msra.mxu0 0.0
    %284 = vmatpush.msra.mxu0 0.0
    %285 = vmatpush.msra.mxu0 0.0
    %286 = vmatpush.msra.mxu0 0.0
    %287 = vmatpush.msra.mxu0 %v193
    %288 = vmatpush.msra.mxu0 %v192
    %289 = vmatmul.f32.gmra.mxu0 %v271
    %v290 = vpop.f32.mrf.mxu0
    %v291 = vadd.f32 0.0, %v290
    %292 = vdwg.mxu0
    %v294 = vsel %vm224, %v267, 0
    %296 = vmatpush.msra.mxu0 0.0
    %297 = vmatpush.msra.mxu0 0.0
    %298 = vmatpush.msra.mxu0 0.0
    %299 = vmatpush.msra.mxu0 0.0
    %300 = vmatpush.msra.mxu0 0.0
    %301 = vmatpush.msra.mxu0 0.0
    %302 = vmatpush.msra.mxu0 0.0
    %303 = vmatpush.msra.mxu0 0.0
    %304 = vmatpush.msra.mxu0 0.0
    %305 = vmatpush.msra.mxu0 0.0
    %306 = vmatpush.msra.mxu0 0.0
    %307 = vmatpush.msra.mxu0 0.0
    %308 = vmatpush.msra.mxu0 0.0
    %309 = vmatpush.msra.mxu0 0.0
    %310 = vmatpush.msra.mxu0 %v195
    %311 = vmatpush.msra.mxu0 %v194
    %312 = vmatmul.f32.gmra.mxu0 %v294
    %v313 = vpop.f32.mrf.mxu0
    %v314 = vadd.f32 0.0, %v313
    %315 = vdwg.mxu0
    %v317 = vsel %vm224, %v268, 0
    %319 = vmatpush.msra.mxu0 0.0
    %320 = vmatpush.msra.mxu0 0.0
    %321 = vmatpush.msra.mxu0 0.0
    %322 = vmatpush.msra.mxu0 0.0
    %323 = vmatpush.msra.mxu0 0.0
    %324 = vmatpush.msra.mxu0 0.0
    %325 = vmatpush.msra.mxu0 0.0
    %326 = vmatpush.msra.mxu0 0.0
    %327 = vmatpush.msra.mxu0 0.0
    %328 = vmatpush.msra.mxu0 0.0
    %329 = vmatpush.msra.mxu0 0.0
    %330 = vmatpush.msra.mxu0 0.0
    %331 = vmatpush.msra.mxu0 0.0
    %332 = vmatpush.msra.mxu0 0.0
    %333 = vmatpush.msra.mxu0 %v197
    %334 = vmatpush.msra.mxu0 %v196
    %335 = vmatmul.f32.gmra.mxu0 %v317
    %v336 = vpop.f32.mrf.mxu0
    %v337 = vadd.f32 0.0, %v336
    %338 = vdwg.mxu0
    %v340 = vsel %vm224, %v269, 0
    %342 = vmatpush.msra.mxu0 0.0
    %343 = vmatpush.msra.mxu0 0.0
    %344 = vmatpush.msra.mxu0 0.0
    %345 = vmatpush.msra.mxu0 0.0
    %346 = vmatpush.msra.mxu0 0.0
    %347 = vmatpush.msra.mxu0 0.0
    %348 = vmatpush.msra.mxu0 0.0
    %349 = vmatpush.msra.mxu0 0.0
    %350 = vmatpush.msra.mxu0 0.0
    %351 = vmatpush.msra.mxu0 0.0
    %352 = vmatpush.msra.mxu0 0.0
    %353 = vmatpush.msra.mxu0 0.0
    %354 = vmatpush.msra.mxu0 0.0
    %355 = vmatpush.msra.mxu0 0.0
    %356 = vmatpush.msra.mxu0 %v199
    %357 = vmatpush.msra.mxu0 %v198
    %358 = vmatmul.f32.gmra.mxu0 %v340
    %v359 = vpop.f32.mrf.mxu0
    %v360 = vadd.f32 0.0, %v359
    %361 = vdwg.mxu0
    %v362 = vld [vmem:[%s6] sm:$0xff]
    %v363 = vld [vmem:[%s6 + $0x8] sm:$0xff]
    %v364 = vld [vmem:[%s6 + $0x10] sm:$0xff]
    %v365 = vld [vmem:[%s6 + $0x18] sm:$0xff]
    %v366 = vld [vmem:[%s6 + $0x20] sm:$0xff]
    %v367 = vld [vmem:[%s6 + $0x28] sm:$0xff]
    %v368 = vld [vmem:[%s6 + $0x30] sm:$0xff]
    %v369 = vld [vmem:[%s6 + $0x38] sm:$0xff]
    %v371 = vsel %vm224, %v291, 0
    %373 = vmatpush.msra.mxu0 0.0
    %374 = vmatpush.msra.mxu0 0.0
    %375 = vmatpush.msra.mxu0 0.0
    %376 = vmatpush.msra.mxu0 0.0
    %377 = vmatpush.msra.mxu0 0.0
    %378 = vmatpush.msra.mxu0 0.0
    %379 = vmatpush.msra.mxu0 0.0
    %380 = vmatpush.msra.mxu0 0.0
    %381 = vmatpush.msra.mxu0 0.0
    %382 = vmatpush.msra.mxu0 0.0
    %383 = vmatpush.msra.mxu0 0.0
    %384 = vmatpush.msra.mxu0 0.0
    %385 = vmatpush.msra.mxu0 0.0
    %386 = vmatpush.msra.mxu0 0.0
    %387 = vmatpush.msra.mxu0 %v363
    %388 = vmatpush.msra.mxu0 %v362
    %389 = vmatmul.f32.gmra.mxu0 %v371
    %v390 = vpop.f32.mrf.mxu0
    %v391 = vadd.f32 0.0, %v390
    %392 = vdwg.mxu0
    %v394 = vsel %vm224, %v314, 0
    %396 = vmatpush.msra.mxu0 0.0
    %397 = vmatpush.msra.mxu0 0.0
    %398 = vmatpush.msra.mxu0 0.0
    %399 = vmatpush.msra.mxu0 0.0
    %400 = vmatpush.msra.mxu0 0.0
    %401 = vmatpush.msra.mxu0 0.0
    %402 = vmatpush.msra.mxu0 0.0
    %403 = vmatpush.msra.mxu0 0.0
    %404 = vmatpush.msra.mxu0 0.0
    %405 = vmatpush.msra.mxu0 0.0
    %406 = vmatpush.msra.mxu0 0.0
    %407 = vmatpush.msra.mxu0 0.0
    %408 = vmatpush.msra.mxu0 0.0
    %409 = vmatpush.msra.mxu0 0.0
    %410 = vmatpush.msra.mxu0 %v365
    %411 = vmatpush.msra.mxu0 %v364
    %412 = vmatmul.f32.gmra.mxu0 %v394
    %v413 = vpop.f32.mrf.mxu0
    %v414 = vadd.f32 0.0, %v413
    %415 = vdwg.mxu0
    %v417 = vsel %vm224, %v337, 0
    %419 = vmatpush.msra.mxu0 0.0
    %420 = vmatpush.msra.mxu0 0.0
    %421 = vmatpush.msra.mxu0 0.0
    %422 = vmatpush.msra.mxu0 0.0
    %423 = vmatpush.msra.mxu0 0.0
    %424 = vmatpush.msra.mxu0 0.0
    %425 = vmatpush.msra.mxu0 0.0
    %426 = vmatpush.msra.mxu0 0.0
    %427 = vmatpush.msra.mxu0 0.0
    %428 = vmatpush.msra.mxu0 0.0
    %429 = vmatpush.msra.mxu0 0.0
    %430 = vmatpush.msra.mxu0 0.0
    %431 = vmatpush.msra.mxu0 0.0
    %432 = vmatpush.msra.mxu0 0.0
    %433 = vmatpush.msra.mxu0 %v367
    %434 = vmatpush.msra.mxu0 %v366
    %435 = vmatmul.f32.gmra.mxu0 %v417
    %v436 = vpop.f32.mrf.mxu0
    %v437 = vadd.f32 0.0, %v436
    %438 = vdwg.mxu0
    %v440 = vsel %vm224, %v360, 0
    %442 = vmatpush.msra.mxu0 0.0
    %443 = vmatpush.msra.mxu0 0.0
    %444 = vmatpush.msra.mxu0 0.0
    %445 = vmatpush.msra.mxu0 0.0
    %446 = vmatpush.msra.mxu0 0.0
    %447 = vmatpush.msra.mxu0 0.0
    %448 = vmatpush.msra.mxu0 0.0
    %449 = vmatpush.msra.mxu0 0.0
    %450 = vmatpush.msra.mxu0 0.0
    %451 = vmatpush.msra.mxu0 0.0
    %452 = vmatpush.msra.mxu0 0.0
    %453 = vmatpush.msra.mxu0 0.0
    %454 = vmatpush.msra.mxu0 0.0
    %455 = vmatpush.msra.mxu0 0.0
    %456 = vmatpush.msra.mxu0 %v369
    %457 = vmatpush.msra.mxu0 %v368
    %458 = vmatmul.f32.gmra.mxu0 %v440
    %v459 = vpop.f32.mrf.mxu0
    %v460 = vadd.f32 0.0, %v459
    %461 = vdwg.mxu0
    %v462 = vmul.f32 %v391, 0.25
    %v463 = vmul.f32 %v414, 0.25
    %v464 = vmul.f32 %v437, 0.25
    %v465 = vmul.f32 %v460, 0.25
    %v466 = vld [vmem:[%s165] sm:$0xff]
    %v467 = vld [vmem:[%s165 + $0x8] sm:$0xff]
    %v468 = vld [vmem:[%s165 + $0x10] sm:$0xff]
    %v469 = vld [vmem:[%s165 + $0x18] sm:$0xff]
    %v470 = vsub.f32 %v466, %v462
    %v471 = vsub.f32 %v467, %v463
    %v472 = vsub.f32 %v468, %v464
    %v473 = vsub.f32 %v469, %v465
    %v474 = vmul.f32 %v470, %v470
    %v475 = vmul.f32 %v471, %v471
    %v476 = vmul.f32 %v472, %v472
    %v477 = vmul.f32 %v473, %v473
    %vm478 = vcmask 64512
    %v479 = vsel %vm478, %v474, 0.0
    %v480 = vsel %vm478, %v475, 0.0
    %v481 = vadd.f32 %v479, %v480
    %v482 = vsel %vm478, %v476, 0.0
    %v483 = vadd.f32 %v481, %v482
    %v484 = vsel %vm478, %v477, 0.0
    %v485 = vadd.f32 %v483, %v484
    %v486 = vsel %vm478, 1.0, 0
    %488 = vmatpush.msra.mxu0 0.0
    %489 = vmatpush.msra.mxu0 0.0
    %490 = vmatpush.msra.mxu0 0.0
    %491 = vmatpush.msra.mxu0 0.0
    %492 = vmatpush.msra.mxu0 0.0
    %493 = vmatpush.msra.mxu0 0.0
    %494 = vmatpush.msra.mxu0 0.0
    %495 = vmatpush.msra.mxu0 0.0
    %496 = vmatpush.msra.mxu0 0.0
    %497 = vmatpush.msra.mxu0 0.0
    %498 = vmatpush.msra.mxu0 0.0
    %499 = vmatpush.msra.mxu0 0.0
    %500 = vmatpush.msra.mxu0 0.0
    %501 = vmatpush.msra.mxu0 0.0
    %502 = vmatpush.msra.mxu0 0.0
    %503 = vmatpush.msra.mxu0 %v485
    %504 = vmatmul.f32.gmra.mxu0 %v486
    %v505 = vpop.f32.mrf.mxu0
    %v506 = vadd.f32 0.0, %v505
    %507 = vdwg.mxu0
    %v508 = vld [vmem:[#allocation2] sm:$0xff]
    %v509 = vmul.f32 %v506, 7.8125e-05
    %v510 = vadd.f32 %v508, %v509
    %511 = vst.msk [vmem:[#allocation2] sm:$0xff] %vm478, %v510
    %v512 = vld [vmem:[#allocation8] sm:$0xf]
    %v513 = vld [vmem:[#allocation8 + $0x4] sm:$0xf]
    %v514 = vld [vmem:[#allocation8 + $0x8] sm:$0xf]
    %v515 = vld [vmem:[#allocation8 + $0xc] sm:$0xf]
    %v517 = vsel %vm478, %v512, 0
    %519 = vmatpush.msra.mxu0 0.0
    %520 = vmatpush.msra.mxu0 0.0
    %521 = vmatpush.msra.mxu0 0.0
    %522 = vmatpush.msra.mxu0 0.0
    %523 = vmatpush.msra.mxu0 0.0
    %524 = vmatpush.msra.mxu0 0.0
    %525 = vmatpush.msra.mxu0 0.0
    %526 = vmatpush.msra.mxu0 0.0
    %527 = vmatpush.msra.mxu0 0.0
    %528 = vmatpush.msra.mxu0 0.0
    %529 = vmatpush.msra.mxu0 0.0
    %530 = vmatpush.msra.mxu0 0.0
    %531 = vmatpush.msra.mxu0 0.0
    %532 = vmatpush.msra.mxu0 0.0
    %533 = vmatpush.msra.mxu0 0.0
    %534 = vmatpush.msra.mxu0 %v462
    %535 = vmatmul.f32.gmra.mxu0 %v517
    %v536 = vpop.f32.mrf.mxu0
    %v537 = vadd.f32 0.0, %v536
    %538 = vdwg.mxu0
    %v540 = vsel %vm478, %v513, 0
    %542 = vmatpush.msra.mxu0 0.0
    %543 = vmatpush.msra.mxu0 0.0
    %544 = vmatpush.msra.mxu0 0.0
    %545 = vmatpush.msra.mxu0 0.0
    %546 = vmatpush.msra.mxu0 0.0
    %547 = vmatpush.msra.mxu0 0.0
    %548 = vmatpush.msra.mxu0 0.0
    %549 = vmatpush.msra.mxu0 0.0
    %550 = vmatpush.msra.mxu0 0.0
    %551 = vmatpush.msra.mxu0 0.0
    %552 = vmatpush.msra.mxu0 0.0
    %553 = vmatpush.msra.mxu0 0.0
    %554 = vmatpush.msra.mxu0 0.0
    %555 = vmatpush.msra.mxu0 0.0
    %556 = vmatpush.msra.mxu0 0.0
    %557 = vmatpush.msra.mxu0 %v463
    %558 = vmatmul.f32.gmra.mxu0 %v540
    %v559 = vpop.f32.mrf.mxu0
    %v560 = vadd.f32 0.0, %v559
    %561 = vdwg.mxu0
    %v563 = vsel %vm478, %v514, 0
    %565 = vmatpush.msra.mxu0 0.0
    %566 = vmatpush.msra.mxu0 0.0
    %567 = vmatpush.msra.mxu0 0.0
    %568 = vmatpush.msra.mxu0 0.0
    %569 = vmatpush.msra.mxu0 0.0
    %570 = vmatpush.msra.mxu0 0.0
    %571 = vmatpush.msra.mxu0 0.0
    %572 = vmatpush.msra.mxu0 0.0
    %573 = vmatpush.msra.mxu0 0.0
    %574 = vmatpush.msra.mxu0 0.0
    %575 = vmatpush.msra.mxu0 0.0
    %576 = vmatpush.msra.mxu0 0.0
    %577 = vmatpush.msra.mxu0 0.0
    %578 = vmatpush.msra.mxu0 0.0
    %579 = vmatpush.msra.mxu0 0.0
    %580 = vmatpush.msra.mxu0 %v464
    %581 = vmatmul.f32.gmra.mxu0 %v563
    %v582 = vpop.f32.mrf.mxu0
    %v583 = vadd.f32 0.0, %v582
    %584 = vdwg.mxu0
    %v586 = vsel %vm478, %v515, 0
    %588 = vmatpush.msra.mxu0 0.0
    %589 = vmatpush.msra.mxu0 0.0
    %590 = vmatpush.msra.mxu0 0.0
    %591 = vmatpush.msra.mxu0 0.0
    %592 = vmatpush.msra.mxu0 0.0
    %593 = vmatpush.msra.mxu0 0.0
    %594 = vmatpush.msra.mxu0 0.0
    %595 = vmatpush.msra.mxu0 0.0
    %596 = vmatpush.msra.mxu0 0.0
    %597 = vmatpush.msra.mxu0 0.0
    %598 = vmatpush.msra.mxu0 0.0
    %599 = vmatpush.msra.mxu0 0.0
    %600 = vmatpush.msra.mxu0 0.0
    %601 = vmatpush.msra.mxu0 0.0
    %602 = vmatpush.msra.mxu0 0.0
    %603 = vmatpush.msra.mxu0 %v465
    %604 = vmatmul.f32.gmra.mxu0 %v586
    %v605 = vpop.f32.mrf.mxu0
    %v606 = vadd.f32 0.0, %v605
    %607 = vdwg.mxu0
    %v608 = vld [vmem:[%s8] sm:$0xff]
    %v609 = vld [vmem:[%s8 + $0x8] sm:$0xff]
    %v610 = vld [vmem:[%s8 + $0x10] sm:$0xff]
    %v611 = vld [vmem:[%s8 + $0x18] sm:$0xff]
    %v613 = vsel %vm478, %v537, 0
    %615 = vmatpush.msra.mxu0 0.0
    %616 = vmatpush.msra.mxu0 0.0
    %617 = vmatpush.msra.mxu0 0.0
    %618 = vmatpush.msra.mxu0 0.0
    %619 = vmatpush.msra.mxu0 0.0
    %620 = vmatpush.msra.mxu0 0.0
    %621 = vmatpush.msra.mxu0 0.0
    %622 = vmatpush.msra.mxu0 0.0
    %623 = vmatpush.msra.mxu0 0.0
    %624 = vmatpush.msra.mxu0 0.0
    %625 = vmatpush.msra.mxu0 0.0
    %626 = vmatpush.msra.mxu0 0.0
    %627 = vmatpush.msra.mxu0 0.0
    %628 = vmatpush.msra.mxu0 0.0
    %629 = vmatpush.msra.mxu0 0.0
    %630 = vmatpush.msra.mxu0 %v608
    %631 = vmatmul.f32.gmra.mxu0 %v613
    %v632 = vpop.f32.mrf.mxu0
    %v633 = vadd.f32 0.0, %v632
    %634 = vdwg.mxu0
    %v636 = vsel %vm478, %v560, 0
    %638 = vmatpush.msra.mxu0 0.0
    %639 = vmatpush.msra.mxu0 0.0
    %640 = vmatpush.msra.mxu0 0.0
    %641 = vmatpush.msra.mxu0 0.0
    %642 = vmatpush.msra.mxu0 0.0
    %643 = vmatpush.msra.mxu0 0.0
    %644 = vmatpush.msra.mxu0 0.0
    %645 = vmatpush.msra.mxu0 0.0
    %646 = vmatpush.msra.mxu0 0.0
    %647 = vmatpush.msra.mxu0 0.0
    %648 = vmatpush.msra.mxu0 0.0
    %649 = vmatpush.msra.mxu0 0.0
    %650 = vmatpush.msra.mxu0 0.0
    %651 = vmatpush.msra.mxu0 0.0
    %652 = vmatpush.msra.mxu0 0.0
    %653 = vmatpush.msra.mxu0 %v609
    %654 = vmatmul.f32.gmra.mxu0 %v636
    %v655 = vpop.f32.mrf.mxu0
    %v656 = vadd.f32 0.0, %v655
    %657 = vdwg.mxu0
    %v659 = vsel %vm478, %v583, 0
    %661 = vmatpush.msra.mxu0 0.0
    %662 = vmatpush.msra.mxu0 0.0
    %663 = vmatpush.msra.mxu0 0.0
    %664 = vmatpush.msra.mxu0 0.0
    %665 = vmatpush.msra.mxu0 0.0
    %666 = vmatpush.msra.mxu0 0.0
    %667 = vmatpush.msra.mxu0 0.0
    %668 = vmatpush.msra.mxu0 0.0
    %669 = vmatpush.msra.mxu0 0.0
    %670 = vmatpush.msra.mxu0 0.0
    %671 = vmatpush.msra.mxu0 0.0
    %672 = vmatpush.msra.mxu0 0.0
    %673 = vmatpush.msra.mxu0 0.0
    %674 = vmatpush.msra.mxu0 0.0
    %675 = vmatpush.msra.mxu0 0.0
    %676 = vmatpush.msra.mxu0 %v610
    %677 = vmatmul.f32.gmra.mxu0 %v659
    %v678 = vpop.f32.mrf.mxu0
    %v679 = vadd.f32 0.0, %v678
    %680 = vdwg.mxu0
    %v682 = vsel %vm478, %v606, 0
    %684 = vmatpush.msra.mxu0 0.0
    %685 = vmatpush.msra.mxu0 0.0
    %686 = vmatpush.msra.mxu0 0.0
    %687 = vmatpush.msra.mxu0 0.0
    %688 = vmatpush.msra.mxu0 0.0
    %689 = vmatpush.msra.mxu0 0.0
    %690 = vmatpush.msra.mxu0 0.0
    %691 = vmatpush.msra.mxu0 0.0
    %692 = vmatpush.msra.mxu0 0.0
    %693 = vmatpush.msra.mxu0 0.0
    %694 = vmatpush.msra.mxu0 0.0
    %695 = vmatpush.msra.mxu0 0.0
    %696 = vmatpush.msra.mxu0 0.0
    %697 = vmatpush.msra.mxu0 0.0
    %698 = vmatpush.msra.mxu0 0.0
    %699 = vmatpush.msra.mxu0 %v611
    %700 = vmatmul.f32.gmra.mxu0 %v682
    %v701 = vpop.f32.mrf.mxu0
    %v702 = vadd.f32 0.0, %v701
    %703 = vdwg.mxu0
    %v704 = vmul.f32 %v633, 0.25
    %v705 = vmul.f32 %v656, 0.25
    %v706 = vmul.f32 %v679, 0.25
    %v707 = vmul.f32 %v702, 0.25
    %v708 = vld [vmem:[%s173] sm:$0xf]
    %v709 = vld [vmem:[%s173 + $0x4] sm:$0xf]
    %v710 = vld [vmem:[%s173 + $0x8] sm:$0xf]
    %v711 = vld [vmem:[%s173 + $0xc] sm:$0xf]
    %v712 = vsub.f32 %v708, %v704
    %v713 = vsub.f32 %v709, %v705
    %v714 = vsub.f32 %v710, %v706
    %v715 = vsub.f32 %v711, %v707
    %v716 = vmul.f32 %v712, %v712
    %v717 = vmul.f32 %v713, %v713
    %v718 = vmul.f32 %v714, %v714
    %v719 = vmul.f32 %v715, %v715
    %vm720 = vcmask 27648
    %v721 = vsel %vm720, %v716, 0.0
    %v722 = vsel %vm720, %v717, 0.0
    %v723 = vadd.f32 %v721, %v722
    %v724 = vsel %vm720, %v718, 0.0
    %v725 = vadd.f32 %v723, %v724
    %v726 = vsel %vm720, %v719, 0.0
    %v727 = vadd.f32 %v725, %v726
    %vm728 = vcmask 31744
    %v729 = vsel %vm728, 1.0, 0
    %vm731 = vcmask 1043456
    %v733 = vsel %vm731, %v727, 0
    %735 = vmatpush.msra.mxu0 0.0
    %736 = vmatpush.msra.mxu0 0.0
    %737 = vmatpush.msra.mxu0 0.0
    %738 = vmatpush.msra.mxu0 0.0
    %739 = vmatpush.msra.mxu0 0.0
    %740 = vmatpush.msra.mxu0 0.0
    %741 = vmatpush.msra.mxu0 0.0
    %742 = vmatpush.msra.mxu0 0.0
    %743 = vmatpush.msra.mxu0 0.0
    %744 = vmatpush.msra.mxu0 0.0
    %745 = vmatpush.msra.mxu0 0.0
    %746 = vmatpush.msra.mxu0 0.0
    %747 = vmatpush.msra.mxu0 0.0
    %748 = vmatpush.msra.mxu0 0.0
    %749 = vmatpush.msra.mxu0 0.0
    %750 = vmatpush.msra.mxu0 %v733
    %751 = vmatmul.f32.gmra.mxu0 %v729
    %v752 = vpop.f32.mrf.mxu0
    %v753 = vadd.f32 0.0, %v752
    %754 = vdwg.mxu0
    %v755 = vld [vmem:[#allocation2] sm:$0xff]
    %v756 = vmul.f32 %v753, 0.00125
    %v757 = vadd.f32 %v755, %v756
    %758 = vst.msk [vmem:[#allocation2] sm:$0xff] %vm728, %v757
    %v759 = vld [vmem:[%s9] sm:$0x3]
    %v760 = vld [vmem:[%s9 + $0x2] sm:$0x3]
    %v761 = vld [vmem:[%s9 + $0x4] sm:$0x3]
    %v762 = vld [vmem:[%s9 + $0x6] sm:$0x3]
    %v764 = vsel %vm728, %v759, 0
    %v767 = vsel %vm731, %v704, 0
    %769 = vmatpush.msra.mxu0 0.0
    %770 = vmatpush.msra.mxu0 0.0
    %771 = vmatpush.msra.mxu0 0.0
    %772 = vmatpush.msra.mxu0 0.0
    %773 = vmatpush.msra.mxu0 0.0
    %774 = vmatpush.msra.mxu0 0.0
    %775 = vmatpush.msra.mxu0 0.0
    %776 = vmatpush.msra.mxu0 0.0
    %777 = vmatpush.msra.mxu0 0.0
    %778 = vmatpush.msra.mxu0 0.0
    %779 = vmatpush.msra.mxu0 0.0
    %780 = vmatpush.msra.mxu0 0.0
    %781 = vmatpush.msra.mxu0 0.0
    %782 = vmatpush.msra.mxu0 0.0
    %783 = vmatpush.msra.mxu0 0.0
    %784 = vmatpush.msra.mxu0 %v767
    %785 = vmatmul.f32.gmra.mxu0 %v764
    %v786 = vpop.f32.mrf.mxu0
    %v787 = vadd.f32 0.0, %v786
    %788 = vdwg.mxu0
    %v790 = vsel %vm728, %v760, 0
    %v793 = vsel %vm731, %v705, 0
    %795 = vmatpush.msra.mxu0 0.0
    %796 = vmatpush.msra.mxu0 0.0
    %797 = vmatpush.msra.mxu0 0.0
    %798 = vmatpush.msra.mxu0 0.0
    %799 = vmatpush.msra.mxu0 0.0
    %800 = vmatpush.msra.mxu0 0.0
    %801 = vmatpush.msra.mxu0 0.0
    %802 = vmatpush.msra.mxu0 0.0
    %803 = vmatpush.msra.mxu0 0.0
    %804 = vmatpush.msra.mxu0 0.0
    %805 = vmatpush.msra.mxu0 0.0
    %806 = vmatpush.msra.mxu0 0.0
    %807 = vmatpush.msra.mxu0 0.0
    %808 = vmatpush.msra.mxu0 0.0
    %809 = vmatpush.msra.mxu0 0.0
    %810 = vmatpush.msra.mxu0 %v793
    %811 = vmatmul.f32.gmra.mxu0 %v790
    %v812 = vpop.f32.mrf.mxu0
    %v813 = vadd.f32 0.0, %v812
    %814 = vdwg.mxu0
    %v816 = vsel %vm728, %v761, 0
    %v819 = vsel %vm731, %v706, 0
    %821 = vmatpush.msra.mxu0 0.0
    %822 = vmatpush.msra.mxu0 0.0
    %823 = vmatpush.msra.mxu0 0.0
    %824 = vmatpush.msra.mxu0 0.0
    %825 = vmatpush.msra.mxu0 0.0
    %826 = vmatpush.msra.mxu0 0.0
    %827 = vmatpush.msra.mxu0 0.0
    %828 = vmatpush.msra.mxu0 0.0
    %829 = vmatpush.msra.mxu0 0.0
    %830 = vmatpush.msra.mxu0 0.0
    %831 = vmatpush.msra.mxu0 0.0
    %832 = vmatpush.msra.mxu0 0.0
    %833 = vmatpush.msra.mxu0 0.0
    %834 = vmatpush.msra.mxu0 0.0
    %835 = vmatpush.msra.mxu0 0.0
    %836 = vmatpush.msra.mxu0 %v819
    %837 = vmatmul.f32.gmra.mxu0 %v816
    %v838 = vpop.f32.mrf.mxu0
    %v839 = vadd.f32 0.0, %v838
    %840 = vdwg.mxu0
    %v842 = vsel %vm728, %v762, 0
    %v845 = vsel %vm731, %v707, 0
    %847 = vmatpush.msra.mxu0 0.0
    %848 = vmatpush.msra.mxu0 0.0
    %849 = vmatpush.msra.mxu0 0.0
    %850 = vmatpush.msra.mxu0 0.0
    %851 = vmatpush.msra.mxu0 0.0
    %852 = vmatpush.msra.mxu0 0.0
    %853 = vmatpush.msra.mxu0 0.0
    %854 = vmatpush.msra.mxu0 0.0
    %855 = vmatpush.msra.mxu0 0.0
    %856 = vmatpush.msra.mxu0 0.0
    %857 = vmatpush.msra.mxu0 0.0
    %858 = vmatpush.msra.mxu0 0.0
    %859 = vmatpush.msra.mxu0 0.0
    %860 = vmatpush.msra.mxu0 0.0
    %861 = vmatpush.msra.mxu0 0.0
    %862 = vmatpush.msra.mxu0 %v845
    %863 = vmatmul.f32.gmra.mxu0 %v842
    %v864 = vpop.f32.mrf.mxu0
    %v865 = vadd.f32 0.0, %v864
    %866 = vdwg.mxu0
    %v867 = vld [vmem:[%s10] sm:$0xf]
    %v868 = vld [vmem:[%s10 + $0x4] sm:$0xf]
    %v869 = vld [vmem:[%s10 + $0x8] sm:$0xf]
    %v870 = vld [vmem:[%s10 + $0xc] sm:$0xf]
    %v872 = vsel %vm728, %v787, 0
    %v875 = vsel %vm731, %v867, 0
    %877 = vmatpush.msra.mxu0 0.0
    %878 = vmatpush.msra.mxu0 0.0
    %879 = vmatpush.msra.mxu0 0.0
    %880 = vmatpush.msra.mxu0 0.0
    %881 = vmatpush.msra.mxu0 0.0
    %882 = vmatpush.msra.mxu0 0.0
    %883 = vmatpush.msra.mxu0 0.0
    %884 = vmatpush.msra.mxu0 0.0
    %885 = vmatpush.msra.mxu0 0.0
    %886 = vmatpush.msra.mxu0 0.0
    %887 = vmatpush.msra.mxu0 0.0
    %888 = vmatpush.msra.mxu0 0.0
    %889 = vmatpush.msra.mxu0 0.0
    %890 = vmatpush.msra.mxu0 0.0
    %891 = vmatpush.msra.mxu0 0.0
    %892 = vmatpush.msra.mxu0 %v875
    %893 = vmatmul.f32.gmra.mxu0 %v872
    %v894 = vpop.f32.mrf.mxu0
    %v895 = vadd.f32 0.0, %v894
    %896 = vdwg.mxu0
    %v898 = vsel %vm728, %v813, 0
    %v901 = vsel %vm731, %v868, 0
    %903 = vmatpush.msra.mxu0 0.0
    %904 = vmatpush.msra.mxu0 0.0
    %905 = vmatpush.msra.mxu0 0.0
    %906 = vmatpush.msra.mxu0 0.0
    %907 = vmatpush.msra.mxu0 0.0
    %908 = vmatpush.msra.mxu0 0.0
    %909 = vmatpush.msra.mxu0 0.0
    %910 = vmatpush.msra.mxu0 0.0
    %911 = vmatpush.msra.mxu0 0.0
    %912 = vmatpush.msra.mxu0 0.0
    %913 = vmatpush.msra.mxu0 0.0
    %914 = vmatpush.msra.mxu0 0.0
    %915 = vmatpush.msra.mxu0 0.0
    %916 = vmatpush.msra.mxu0 0.0
    %917 = vmatpush.msra.mxu0 0.0
    %918 = vmatpush.msra.mxu0 %v901
    %919 = vmatmul.f32.gmra.mxu0 %v898
    %v920 = vpop.f32.mrf.mxu0
    %v921 = vadd.f32 0.0, %v920
    %922 = vdwg.mxu0
    %v924 = vsel %vm728, %v839, 0
    %v927 = vsel %vm731, %v869, 0
    %929 = vmatpush.msra.mxu0 0.0
    %930 = vmatpush.msra.mxu0 0.0
    %931 = vmatpush.msra.mxu0 0.0
    %932 = vmatpush.msra.mxu0 0.0
    %933 = vmatpush.msra.mxu0 0.0
    %934 = vmatpush.msra.mxu0 0.0
    %935 = vmatpush.msra.mxu0 0.0
    %936 = vmatpush.msra.mxu0 0.0
    %937 = vmatpush.msra.mxu0 0.0
    %938 = vmatpush.msra.mxu0 0.0
    %939 = vmatpush.msra.mxu0 0.0
    %940 = vmatpush.msra.mxu0 0.0
    %941 = vmatpush.msra.mxu0 0.0
    %942 = vmatpush.msra.mxu0 0.0
    %943 = vmatpush.msra.mxu0 0.0
    %944 = vmatpush.msra.mxu0 %v927
    %945 = vmatmul.f32.gmra.mxu0 %v924
    %v946 = vpop.f32.mrf.mxu0
    %v947 = vadd.f32 0.0, %v946
    %948 = vdwg.mxu0
    %v950 = vsel %vm728, %v865, 0
    %v953 = vsel %vm731, %v870, 0
    %955 = vmatpush.msra.mxu0 0.0
    %956 = vmatpush.msra.mxu0 0.0
    %957 = vmatpush.msra.mxu0 0.0
    %958 = vmatpush.msra.mxu0 0.0
    %959 = vmatpush.msra.mxu0 0.0
    %960 = vmatpush.msra.mxu0 0.0
    %961 = vmatpush.msra.mxu0 0.0
    %962 = vmatpush.msra.mxu0 0.0
    %963 = vmatpush.msra.mxu0 0.0
    %964 = vmatpush.msra.mxu0 0.0
    %965 = vmatpush.msra.mxu0 0.0
    %966 = vmatpush.msra.mxu0 0.0
    %967 = vmatpush.msra.mxu0 0.0
    %968 = vmatpush.msra.mxu0 0.0
    %969 = vmatpush.msra.mxu0 0.0
    %970 = vmatpush.msra.mxu0 %v953
    %971 = vmatmul.f32.gmra.mxu0 %v950
    %v972 = vpop.f32.mrf.mxu0
    %v973 = vadd.f32 0.0, %v972
    %974 = vdwg.mxu0
    %v975 = vmul.f32 %v895, 0.25
    %v976 = vmul.f32 %v921, 0.25
    %v977 = vmul.f32 %v947, 0.25
    %v978 = vmul.f32 %v973, 0.25
    %v979 = vld [vmem:[%s181] sm:$0x3]
    %v980 = vld [vmem:[%s181 + $0x2] sm:$0x3]
    %v981 = vld [vmem:[%s181 + $0x4] sm:$0x3]
    %v982 = vld [vmem:[%s181 + $0x6] sm:$0x3]
    %v983 = vsub.f32 %v979, %v975
    %v984 = vsub.f32 %v980, %v976
    %v985 = vsub.f32 %v981, %v977
    %v986 = vsub.f32 %v982, %v978
    %v987 = vmul.f32 %v983, %v983
    %v988 = vmul.f32 %v984, %v984
    %v989 = vmul.f32 %v985, %v985
    %v990 = vmul.f32 %v986, %v986
    %vm991 = vcmask 9216
    %v992 = vsel %vm991, %v987, 0.0
    %v993 = vsel %vm991, %v988, 0.0
    %v994 = vadd.f32 %v992, %v993
    %v995 = vsel %vm991, %v989, 0.0
    %v996 = vadd.f32 %v994, %v995
    %v997 = vsel %vm991, %v990, 0.0
    %v998 = vadd.f32 %v996, %v997
    %vm999 = vcmask 15360
    %v1000 = vsel %vm999, 1.0, 0
    %vm1002 = vcmask 1041408
    %v1004 = vsel %vm1002, %v998, 0
    %1006 = vmatpush.msra.mxu0 0.0
    %1007 = vmatpush.msra.mxu0 0.0
    %1008 = vmatpush.msra.mxu0 0.0
    %1009 = vmatpush.msra.mxu0 0.0
    %1010 = vmatpush.msra.mxu0 0.0
    %1011 = vmatpush.msra.mxu0 0.0
    %1012 = vmatpush.msra.mxu0 0.0
    %1013 = vmatpush.msra.mxu0 0.0
    %1014 = vmatpush.msra.mxu0 0.0
    %1015 = vmatpush.msra.mxu0 0.0
    %1016 = vmatpush.msra.mxu0 0.0
    %1017 = vmatpush.msra.mxu0 0.0
    %1018 = vmatpush.msra.mxu0 0.0
    %1019 = vmatpush.msra.mxu0 0.0
    %1020 = vmatpush.msra.mxu0 0.0
    %1021 = vmatpush.msra.mxu0 %v1004
    %1022 = vmatmul.f32.gmra.mxu0 %v1000
    %v1023 = vpop.f32.mrf.mxu0
    %v1024 = vadd.f32 0.0, %v1023
    %1025 = vdwg.mxu0
    %v1026 = vld [vmem:[#allocation2] sm:$0xff]
    %v1027 = vmul.f32 %v1024, 0.02
    %v1028 = vadd.f32 %v1026, %v1027
    %1029 = vst.msk [vmem:[#allocation2] sm:$0xff] %vm999, %v1028
    // Predicated region
    $region62: #{tpu_custom_call.1} parent=1 // pred_check
      %p1030 = pneg %p184
    $region63: #{tpu_custom_call.1} parent=1 // pred_check_branch
      %1032 = sbr.rel (%p1030) target = $region65
    $region64: #{tpu_custom_call.1} parent=1 // pred_region
      %v1033 = vld [vmem:[#allocation2] sm:$0xff]
      %v1034 = vsel %vm224, %v1033, 0.0
      %1035 = vadd.xlane.f32.xlu0 %v1034
      %v1036 = vpop.xlane.xlu0 %1035
      %v1037 = vrot.slane %v1036, 4
      %v1038 = vadd.f32 %v1036, %v1037
      %v1039 = vrot.slane %v1038, 2
      %v1040 = vadd.f32 %v1038, %v1039
      %v1041 = vrot.slane %v1040, 1
      %v1042 = vadd.f32 %v1040, %v1041
      %s1043 = vtos %v1042
      %s1044 = smul.f32 %s1043, 0.125
      %s1045 = scalar_lea.smem [#allocation9], 0
      %1046 = sst [smem:[%s1045]] %s1044
    $region65: #{tpu_custom_call.1} parent=1 // pred_fallthru
      _
    // Predicated region
    $region66: #{tpu_custom_call.1} parent=1 // pred_check
      _
    $region67: #{tpu_custom_call.1} parent=1 // pred_check_branch
      %1048 = sbr.rel (0) target = $region69
    $region68: #{tpu_custom_call.1} parent=1 // pred_region
      %1050 = vsyncadd [#allocation5], 0
      %s1052 = sshll.u32 %s11, 4
      %s1053 = int_to_ptr.hbm [resolvable:$true] %s1052
      %1055 = dma.smem_to_hbm [#allocation9], 16, %s1053, [#allocation5]
    $region69: #{tpu_custom_call.1} parent=1 // pred_fallthru
      _
    // Predicated region
    $region70: #{tpu_custom_call.1} parent=1 // pred_check
      _
    $region71: #{tpu_custom_call.1} parent=1 // pred_check_branch
      %1057 = sbr.rel (0) target = $region73
    $region72: #{tpu_custom_call.1} parent=1 // pred_region
      %1059 = dma.done [#allocation5], 16
    $region73: #{tpu_custom_call.1} parent=1 // pred_fallthru
      _
    %1060 = sfence
    %1061 = vsyncpa [#allocation4], 1
    %1062 = vsyncpa [#allocation7], 1
    %1063 = vsyncpa [#allocation5], 1

</llo_original>
